<compile_context>
chip_gen: v5e
topology: v5e:2x2
jax: 0.10.0
libtpu: 0.0.40
codegen_flags: <defaults>
</compile_context>

<pallas_src>
import functools

import jax
import jax.numpy as jnp
from jax.experimental import pallas as pl
from jax.experimental.pallas import tpu as pltpu


HIDDEN = 256  # fixed by the PyTorch module definition


def _ppo_eval_kernel(state_ref, action_ref,
                     w1f_ref, b1f_ref, w2f_ref, b2f_ref,
                     out_ref, *, action_dim):
    """One batch tile.  Output slab layout (128 lanes):
       [ probs(0:A) | logp @ A | value @ A+1 | entropy @ A+2 | zeros ]."""
    A = action_dim

    x = state_ref[...].astype(jnp.float32)                        # [TB, S]

    # ---- fused layer 1: actor hidden || critic hidden (one MXU pass) ----
    h = jnp.dot(x, w1f_ref[...],
                preferred_element_type=jnp.float32) + b1f_ref[...]
    h = jnp.maximum(h, 0.0)                                       # [TB, 2H]

    # ---- fused layer 2, padded to a lane-dense 128-wide slab ----
    #   lanes 0..A-1 : actor logits, lane A+1 : critic value, rest : 0
    out2 = jnp.dot(h, w2f_ref[...],
                   preferred_element_type=jnp.float32) + b2f_ref[...]  # [TB, NP]

    TB, NP = out2.shape
    lane = jax.lax.broadcasted_iota(jnp.int32, (TB, NP), dimension=1)

    # ---- masked, numerically-stable log-softmax over the valid logit lanes ----
    NEG = jnp.float32(-1e30)                         # exp underflows to exactly 0
    logits = jnp.where(lane < A, out2, NEG)
    m = jnp.max(logits, axis=-1, keepdims=True)
    shifted = logits - m
    denom = jnp.sum(jnp.exp(shifted), axis=-1, keepdims=True)
    log_probs = shifted - jnp.log(denom)             # padded lanes: finite, huge-neg
    probs = jnp.exp(log_probs)                       # padded lanes: exactly 0

    # log_prob of the taken action (lane select, no gather)
    a = action_ref[...]                                            # [TB, 1] int32
    logp = jnp.sum(jnp.where(lane == a, log_probs, 0.0),
                   axis=-1, keepdims=True)                         # [TB, 1]

    # entropy = -sum(p * log p); padded lanes contribute exactly 0
    ent = -jnp.sum(probs * log_probs, axis=-1, keepdims=True)      # [TB, 1]

    # ---- assemble packed slab with lane-id selects; single unmasked store ----
    extra = jnp.where(lane == A, logp,
            jnp.where(lane == A + 1, out2,          # value already sits at lane A+1
            jnp.where(lane == A + 2, ent, 0.0)))
    out_ref[...] = probs + extra


def _num_tensorcores():
    """Best-effort TensorCore-per-chip count (v7x has 2, v5e/v6e have 1)."""
    try:
        kind = jax.devices()[0].device_kind.lower()
        if "v7" in kind or "7x" in kind:
            return 2
    except Exception:
        pass
    return 1


def _pick_tile(B, num_cores, cap=4096):
    """One grid step per TensorCore when possible; otherwise the largest
    multiple-of-8 divisor of B under the (v7x-VMEM-safe) row cap."""
    if B <= cap * num_cores:
        if num_cores > 1 and B % num_cores == 0 and (B // num_cores) % 8 == 0:
            return B // num_cores
        return B                                # single grid step (v5e/v6e path)
    t = cap - (cap % 8)
    while t >= 8:
        if B % t == 0:
            return t
        t -= 8
    return B


def fuse_params(params):
    """One-time weight fusion + lane padding (hoisted out of the hot path).

    w1f : [S, 2H]   = [W1 | Wc1]
    b1f : [1, 2H]   = [b1 | bc1]
    w2f : [2H, 128] = columns 0..A-1 -> actor W2 (top half), column A+1 ->
                      critic Wc2 (bottom half), everything else zero.
    b2f : [1, 128]  = lanes 0..A-1 -> b2, lane A+1 -> bc2, rest zero.
    """
    w1, b1, w2, b2 = params["w1"], params["b1"], params["w2"], params["b2"]
    wc1, bc1, wc2, bc2 = params["wc1"], params["bc1"], params["wc2"], params["bc2"]
    S, H = w1.shape
    A = w2.shape[1]
    NP = max(128, ((A + 3 + 127) // 128) * 128)     # lane-dense packed width

    w1f = jnp.concatenate([w1, wc1], axis=1).astype(jnp.float32)        # [S, 2H]
    b1f = jnp.concatenate([b1, bc1], axis=1).astype(jnp.float32)        # [1, 2H]

    w2f = jnp.zeros((2 * H, NP), jnp.float32)
    w2f = w2f.at[:H, :A].set(w2)                    # actor logits -> lanes 0..A-1
    w2f = w2f.at[H:, A + 1].set(wc2[:, 0])          # critic value -> lane A+1
    b2f = jnp.zeros((1, NP), jnp.float32)
    b2f = b2f.at[:, :A].set(b2)
    b2f = b2f.at[:, A + 1].set(bc2[:, 0])
    return dict(w1f=w1f, b1f=b1f, w2f=w2f, b2f=b2f)


def ppo_evaluate(state, action, fused, *, action_dim,
                 batch_tile=None, num_cores=None):
    """Pallas equivalent of BaselineActorCriticPPO.evaluate(state, action).

    Returns (action_logprobs [B], state_value [B], entropy [B], action_probs [B, A]).
    """
    B, S = state.shape
    A = action_dim
    w1f, b1f, w2f, b2f = fused["w1f"], fused["b1f"], fused["w2f"], fused["b2f"]
    H2 = w1f.shape[1]
    NP = w2f.shape[1]

    if num_cores is None:
        num_cores = _num_tensorcores()
    TB = _pick_tile(B, num_cores) if batch_tile is None else batch_tile
    assert B % TB == 0, "batch tile must divide the batch"
    assert TB == B or TB % 8 == 0, "batch tile must be a multiple of 8 (or == B)"
    grid = (B // TB,)

    action2d = action.astype(jnp.int32).reshape(B, 1)

    kernel = functools.partial(_ppo_eval_kernel, action_dim=A)

    tile_map = lambda i: (i, 0)
    full_map = lambda i: (0, 0)

    packed = pl.pallas_call(
        kernel,
        grid=grid,
        in_specs=[
            pl.BlockSpec((TB, S), tile_map),         # state
            pl.BlockSpec((TB, 1), tile_map),         # action
            pl.BlockSpec((S, H2), full_map),         # fused W1  (resident)
            pl.BlockSpec((1, H2), full_map),         # fused b1
            pl.BlockSpec((H2, NP), full_map),        # fused, padded W2
            pl.BlockSpec((1, NP), full_map),         # fused, padded b2
        ],
        out_specs=pl.BlockSpec((TB, NP), tile_map),  # lane-dense packed output
        out_shape=jax.ShapeDtypeStruct((B, NP), jnp.float32),
        compiler_params=pltpu.CompilerParams(
            dimension_semantics=("parallel",)),
    )(state, action2d, w1f, b1f, w2f, b2f)

    logp = packed[:, A]
    value = packed[:, A + 1]
    ent = packed[:, A + 2]
    probs = packed[:, :A]
    return logp, value, ent, probs


def init_params(key, state_dim, action_dim):
    """Deterministic init mimicking nn.Linear's U(-1/sqrt(fan_in), 1/sqrt(fan_in))."""
    ks = jax.random.split(key, 8)

    def lin(kw, kb, fan_in, fan_out):
        bound = 1.0 / jnp.sqrt(jnp.float32(fan_in))
        w = jax.random.uniform(kw, (fan_in, fan_out), jnp.float32, -bound, bound)
        b = jax.random.uniform(kb, (1, fan_out), jnp.float32, -bound, bound)
        return w, b

    w1, b1 = lin(ks[0], ks[1], state_dim, HIDDEN)
    w2, b2 = lin(ks[2], ks[3], HIDDEN, action_dim)
    wc1, bc1 = lin(ks[4], ks[5], state_dim, HIDDEN)
    wc2, bc2 = lin(ks[6], ks[7], HIDDEN, 1)
    return dict(w1=w1, b1=b1, w2=w2, b2=b2,
                wc1=wc1, bc1=bc1, wc2=wc2, bc2=bc2)


def _reference_evaluate(state, action, p):
    """Pure-JAX reference of the PyTorch evaluate()."""
    h = jnp.maximum(state @ p["w1"] + p["b1"], 0.0)
    logits = h @ p["w2"] + p["b2"]
    log_probs = jax.nn.log_softmax(logits, axis=-1)
    probs = jnp.exp(log_probs)
    logp = jnp.take_along_axis(log_probs, action[:, None].astype(jnp.int32), axis=-1)[:, 0]
    ent = -jnp.sum(probs * log_probs, axis=-1)
    hc = jnp.maximum(state @ p["wc1"] + p["bc1"], 0.0)
    value = (hc @ p["wc2"] + p["bc2"])[:, 0]
    return logp, value, ent, probs


if __name__ == "__main__":
    STATE_DIM = 16
    ACTION_DIM = 8
    BATCH = 64     # -> 1 grid step on v5e/v6e, 2 parallel steps on v7x

    key = jax.random.PRNGKey(0)
    k_param, k_state, k_action = jax.random.split(key, 3)

    params = init_params(k_param, STATE_DIM, ACTION_DIM)
    state = jax.random.normal(k_state, (BATCH, STATE_DIM), jnp.float32)
    action = jax.random.randint(k_action, (BATCH,), 0, ACTION_DIM, jnp.int32)

    # hoisted one-time weight fusion / padding
    fused = fuse_params(params)

    eval_fn = jax.jit(functools.partial(ppo_evaluate, action_dim=ACTION_DIM))
    logp, value, ent, probs = eval_fn(state, action, fused)
    jax.block_until_ready((logp, value, ent, probs))

    # correctness check against pure-JAX reference (fused matmuls are exact in
    # f32 thanks to zero-block products; atol covers softmax/exp ulps)
    r_logp, r_value, r_ent, r_probs = _reference_evaluate(state, action, params)
    assert jnp.allclose(logp, r_logp, atol=1e-4), "log_prob mismatch"
    assert jnp.allclose(value, r_value, atol=1e-4), "value mismatch"
    assert jnp.allclose(ent, r_ent, atol=1e-4), "entropy mismatch"
    assert jnp.allclose(probs, r_probs, atol=1e-4), "probs mismatch"

    print("KERNEL_OK")
</pallas_src>

<mosaic_0001>
module attributes {stable_mosaic.version = 11 : i64} {
  func.func @_ppo_eval_kernel(%arg0: i32, %arg1: memref<64x16xf32, #tpu.memory_space<vmem>>, %arg2: memref<64x1xi32, #tpu.memory_space<vmem>>, %arg3: memref<16x512xf32, #tpu.memory_space<vmem>>, %arg4: memref<1x512xf32, #tpu.memory_space<vmem>>, %arg5: memref<512x128xf32, #tpu.memory_space<vmem>>, %arg6: memref<1x128xf32, #tpu.memory_space<vmem>>, %arg7: memref<64x128xf32, #tpu.memory_space<vmem>>) attributes {dimension_semantics = [#tpu.dimension_semantics<parallel>], iteration_bounds = array<i64: 1>, scalar_prefetch = 0 : i64, scratch_operands = 0 : i64, tpu.core_type = #tpu.core_type<tc>, window_params = [{transform_indices = @transform_0, window_bounds = array<i64: 64, 16>}, {transform_indices = @transform_1, window_bounds = array<i64: 64, 1>}, {pipeline_mode = #tpu.pipeline_mode<synchronous>, transform_indices = @transform_2, window_bounds = array<i64: 16, 512>}, {pipeline_mode = #tpu.pipeline_mode<synchronous>, transform_indices = @transform_3, window_bounds = array<i64: 1, 512>}, {pipeline_mode = #tpu.pipeline_mode<synchronous>, transform_indices = @transform_4, window_bounds = array<i64: 512, 128>}, {pipeline_mode = #tpu.pipeline_mode<synchronous>, transform_indices = @transform_5, window_bounds = array<i64: 1, 128>}, {transform_indices = @transform_6, window_bounds = array<i64: 64, 128>}]} {
    %c0 = arith.constant 0 : index
    %c0_0 = arith.constant 0 : index
    %0 = vector.load %arg1[%c0, %c0_0] : memref<64x16xf32, #tpu.memory_space<vmem>>, vector<64x16xf32>
    %c0_1 = arith.constant 0 : index
    %c0_2 = arith.constant 0 : index
    %1 = vector.load %arg3[%c0_1, %c0_2] : memref<16x512xf32, #tpu.memory_space<vmem>>, vector<16x512xf32>
    %cst = arith.constant dense<0.000000e+00> : vector<64x512xf32>
    %2 = tpu.matmul %0, %1, %cst {dimension_numbers = #tpu.dot_dimension_numbers<[1], [0], [0], [1], [0, 0, 1, 1], [], []>} : vector<64x16xf32>, vector<16x512xf32>, vector<64x512xf32> -> vector<64x512xf32>
    %c0_3 = arith.constant 0 : index
    %c0_4 = arith.constant 0 : index
    %3 = vector.load %arg4[%c0_3, %c0_4] : memref<1x512xf32, #tpu.memory_space<vmem>>, vector<1x512xf32>
    %4 = vector.broadcast %3 : vector<1x512xf32> to vector<64x512xf32>
    %5 = arith.addf %2, %4 : vector<64x512xf32>
    %cst_5 = arith.constant 0.000000e+00 : f32
    %6 = vector.broadcast %cst_5 : f32 to vector<64x512xf32>
    %7 = arith.maximumf %5, %6 : vector<64x512xf32>
    %c0_6 = arith.constant 0 : index
    %c0_7 = arith.constant 0 : index
    %8 = vector.load %arg5[%c0_6, %c0_7] : memref<512x128xf32, #tpu.memory_space<vmem>>, vector<512x128xf32>
    %cst_8 = arith.constant dense<0.000000e+00> : vector<64x128xf32>
    %9 = tpu.matmul %7, %8, %cst_8 {dimension_numbers = #tpu.dot_dimension_numbers<[1], [0], [0], [1], [0, 0, 1, 1], [], []>} : vector<64x512xf32>, vector<512x128xf32>, vector<64x128xf32> -> vector<64x128xf32>
    %c0_9 = arith.constant 0 : index
    %c0_10 = arith.constant 0 : index
    %10 = vector.load %arg6[%c0_9, %c0_10] : memref<1x128xf32, #tpu.memory_space<vmem>>, vector<1x128xf32>
    %11 = vector.broadcast %10 : vector<1x128xf32> to vector<64x128xf32>
    %12 = arith.addf %9, %11 : vector<64x128xf32>
    %13 = tpu.iota {dimensions = array<i32: 1>} : vector<64x128xi32>
    %c8_i32 = arith.constant 8 : i32
    %14 = vector.broadcast %c8_i32 : i32 to vector<64x128xi32>
    %15 = arith.cmpi slt, %13, %14 : vector<64x128xi32>
    %cst_11 = arith.constant -1.000000e+30 : f32
    %16 = vector.broadcast %cst_11 : f32 to vector<64x128xf32>
    %17 = arith.select %15, %12, %16 : vector<64x128xi1>, vector<64x128xf32>
    %cst_12 = arith.constant dense<0xFF800000> : vector<64xf32>
    %18 = vector.multi_reduction <maximumf>, %17, %cst_12 [1] : vector<64x128xf32> to vector<64xf32>
    %19 = vector.shape_cast %18 : vector<64xf32> to vector<64x1xf32>
    %20 = vector.broadcast %19 : vector<64x1xf32> to vector<64x128xf32>
    %21 = arith.subf %17, %20 : vector<64x128xf32>
    %22 = math.exp %21 : vector<64x128xf32>
    %cst_13 = arith.constant dense<0.000000e+00> : vector<64xf32>
    %23 = vector.multi_reduction <add>, %22, %cst_13 [1] : vector<64x128xf32> to vector<64xf32>
    %24 = vector.shape_cast %23 : vector<64xf32> to vector<64x1xf32>
    %25 = math.log %24 : vector<64x1xf32>
    %26 = vector.broadcast %25 : vector<64x1xf32> to vector<64x128xf32>
    %27 = arith.subf %21, %26 : vector<64x128xf32>
    %28 = math.exp %27 : vector<64x128xf32>
    %c0_14 = arith.constant 0 : index
    %c0_15 = arith.constant 0 : index
    %29 = vector.load %arg2[%c0_14, %c0_15] : memref<64x1xi32, #tpu.memory_space<vmem>>, vector<64x1xi32>
    %30 = vector.broadcast %29 : vector<64x1xi32> to vector<64x128xi32>
    %31 = arith.cmpi eq, %13, %30 : vector<64x128xi32>
    %cst_16 = arith.constant 0.000000e+00 : f32
    %32 = vector.broadcast %cst_16 : f32 to vector<64x128xf32>
    %33 = arith.select %31, %27, %32 : vector<64x128xi1>, vector<64x128xf32>
    %cst_17 = arith.constant dense<0.000000e+00> : vector<64xf32>
    %34 = vector.multi_reduction <add>, %33, %cst_17 [1] : vector<64x128xf32> to vector<64xf32>
    %35 = vector.shape_cast %34 : vector<64xf32> to vector<64x1xf32>
    %36 = arith.mulf %28, %27 : vector<64x128xf32>
    %cst_18 = arith.constant dense<0.000000e+00> : vector<64xf32>
    %37 = vector.multi_reduction <add>, %36, %cst_18 [1] : vector<64x128xf32> to vector<64xf32>
    %38 = vector.shape_cast %37 : vector<64xf32> to vector<64x1xf32>
    %cst_19 = arith.constant 0.000000e+00 : f32
    %39 = vector.broadcast %cst_19 : f32 to vector<64x1xf32>
    %40 = arith.subf %39, %38 : vector<64x1xf32>
    %c8_i32_20 = arith.constant 8 : i32
    %41 = vector.broadcast %c8_i32_20 : i32 to vector<64x128xi32>
    %42 = arith.cmpi eq, %13, %41 : vector<64x128xi32>
    %c9_i32 = arith.constant 9 : i32
    %43 = vector.broadcast %c9_i32 : i32 to vector<64x128xi32>
    %44 = arith.cmpi eq, %13, %43 : vector<64x128xi32>
    %c10_i32 = arith.constant 10 : i32
    %45 = vector.broadcast %c10_i32 : i32 to vector<64x128xi32>
    %46 = arith.cmpi eq, %13, %45 : vector<64x128xi32>
    %cst_21 = arith.constant 0.000000e+00 : f32
    %47 = vector.shape_cast %40 : vector<64x1xf32> to vector<64x1xf32>
    %48 = vector.broadcast %47 : vector<64x1xf32> to vector<64x128xf32>
    %49 = vector.broadcast %cst_21 : f32 to vector<64x128xf32>
    %50 = arith.select %46, %48, %49 : vector<64x128xi1>, vector<64x128xf32>
    %51 = arith.select %44, %12, %50 : vector<64x128xi1>, vector<64x128xf32>
    %52 = vector.shape_cast %35 : vector<64x1xf32> to vector<64x1xf32>
    %53 = vector.broadcast %52 : vector<64x1xf32> to vector<64x128xf32>
    %54 = arith.select %42, %53, %51 : vector<64x128xi1>, vector<64x128xf32>
    %55 = arith.addf %28, %54 : vector<64x128xf32>
    %c0_22 = arith.constant 0 : index
    %c0_23 = arith.constant 0 : index
    %56 = vector.load %arg7[%c0_22, %c0_23] : memref<64x128xf32, #tpu.memory_space<vmem>>, vector<64x128xf32>
    tpu.vector_store %arg7[%c0_22, %c0_23], %55 {strides = array<i32>} : memref<64x128xf32, #tpu.memory_space<vmem>>, vector<64x128xf32>,
    return
  }
  func.func @transform_0(%arg0: i32) -> (i32, i32) {
    %c0_i32 = arith.constant 0 : i32
    %c0_i32_0 = arith.constant 0 : i32
    return %arg0, %c0_i32 : i32, i32
  }
  func.func @transform_1(%arg0: i32) -> (i32, i32) {
    %c0_i32 = arith.constant 0 : i32
    %c0_i32_0 = arith.constant 0 : i32
    return %arg0, %c0_i32 : i32, i32
  }
  func.func @transform_2(%arg0: i32) -> (i32, i32) {
    %c0_i32 = arith.constant 0 : i32
    %c0_i32_0 = arith.constant 0 : i32
    %c0_i32_1 = arith.constant 0 : i32
    return %c0_i32, %c0_i32_0 : i32, i32
  }
  func.func @transform_3(%arg0: i32) -> (i32, i32) {
    %c0_i32 = arith.constant 0 : i32
    %c0_i32_0 = arith.constant 0 : i32
    %c0_i32_1 = arith.constant 0 : i32
    return %c0_i32, %c0_i32_0 : i32, i32
  }
  func.func @transform_4(%arg0: i32) -> (i32, i32) {
    %c0_i32 = arith.constant 0 : i32
    %c0_i32_0 = arith.constant 0 : i32
    %c0_i32_1 = arith.constant 0 : i32
    return %c0_i32, %c0_i32_0 : i32, i32
  }
  func.func @transform_5(%arg0: i32) -> (i32, i32) {
    %c0_i32 = arith.constant 0 : i32
    %c0_i32_0 = arith.constant 0 : i32
    %c0_i32_1 = arith.constant 0 : i32
    return %c0_i32, %c0_i32_0 : i32, i32
  }
  func.func @transform_6(%arg0: i32) -> (i32, i32) {
    %c0_i32 = arith.constant 0 : i32
    %c0_i32_0 = arith.constant 0 : i32
    return %arg0, %c0_i32 : i32, i32
  }
}

</mosaic_0001>

<llo_original>
// kernel: ppo_evaluate.1
$region0: #{ppo_evaluate.1}
  #allocation0 [shape = 'u32[]', space=smem, size = 0x4, offset = 0x4, fixed_abs, tag = 'smem constant byte address 0x4 - core index']
  #allocation1 [shape = 'u32[72,128]{1,0:T(1,128)}', space=vmem, size = 0x9000, scoped, tag = 'internal scratch']
  %s0 = inlined_call_operand.vmem [shape: f32[64,16], index: 0, kind: input, shape index: {}]
  %s1 = inlined_call_operand.vmem [shape: s32[64,1], index: 1, kind: input, shape index: {}]
  %s2 = inlined_call_operand.vmem [shape: f32[16,512], index: 2, kind: input, shape index: {}]
  %s3 = inlined_call_operand.vmem [shape: f32[1,512], index: 3, kind: input, shape index: {}]
  %s4 = inlined_call_operand.hbm [shape: f32[512,128], index: 4, kind: input, shape index: {}]
  %s5 = inlined_call_operand.vmem [shape: f32[1,128], index: 5, kind: input, shape index: {}]
  %s6 = inlined_call_operand.vmem [shape: f32[64,128], index: 6, kind: output, shape index: {}]
  %s7 = sld [smem:[#allocation0]]
  $region38: #{ppo_evaluate.1} parent=0
    _
  %s9 = ssub.s32 1, %s7
  %s10 = scalar_select 0, %s9, %s7
  $region1: #{ppo_evaluate.1} parent=0
    #allocation2 [shape = 'u8[262144]{0}', space=vmem, size = 0x40000, scoped, tag = 'input window, operand 4, single buffered']
    #allocation3 [shape = 's32[1]{0}', space=sflag, size = 0x4, scoped, tag = 'scoped memory for ppo_evaluate.1']
    %11 = vsyncpa [#allocation3], 0
    // Predicated region
    $region2: #{ppo_evaluate.1} parent=1 // pred_check
      _
    $region3: #{ppo_evaluate.1} parent=1 // pred_check_branch
      %13 = sbr.rel (0) target = $region5
    $region4: #{ppo_evaluate.1} parent=1 // pred_region
      _
    $region5: #{ppo_evaluate.1} parent=1 // pred_fallthru
      _
    // Predicated region
    $region6: #{ppo_evaluate.1} parent=1 // pred_check
      _
    $region7: #{ppo_evaluate.1} parent=1 // pred_check_branch
      %15 = sbr.rel (0) target = $region9
    $region8: #{ppo_evaluate.1} parent=1 // pred_region
      _
    $region9: #{ppo_evaluate.1} parent=1 // pred_fallthru
      _
    // Predicated region
    $region10: #{ppo_evaluate.1} parent=1 // pred_check
      _
    $region11: #{ppo_evaluate.1} parent=1 // pred_check_branch
      %17 = sbr.rel (0) target = $region13
    $region12: #{ppo_evaluate.1} parent=1 // pred_region
      _
    $region13: #{ppo_evaluate.1} parent=1 // pred_fallthru
      _
    // Predicated region
    $region14: #{ppo_evaluate.1} parent=1 // pred_check
      _
    $region15: #{ppo_evaluate.1} parent=1 // pred_check_branch
      %19 = sbr.rel (0) target = $region17
    $region16: #{ppo_evaluate.1} parent=1 // pred_region
      _
    $region17: #{ppo_evaluate.1} parent=1 // pred_fallthru
      _
    // Predicated region
    $region18: #{ppo_evaluate.1} parent=1 // pred_check
      _
    $region19: #{ppo_evaluate.1} parent=1 // pred_check_branch
      %21 = sbr.rel (0) target = $region21
    $region20: #{ppo_evaluate.1} parent=1 // pred_region
      %23 = vsyncadd [#allocation3], 0
      %s24 = sshll.u32 %s4, 4
      %s25 = int_to_ptr.hbm [resolvable:$true] %s24
      %s26 = sshll.u32 [#allocation2], 4
      %s27 = int_to_ptr.vmem [resolvable:$true] %s26
      %32 = dma.hbm_to_vmem [thread:$0]  %s25, 8192, %s27, [#allocation3], 128, 128, 8
    $region21: #{ppo_evaluate.1} parent=1 // pred_fallthru
      _
    // Predicated region
    $region22: #{ppo_evaluate.1} parent=1 // pred_check
      _
    $region23: #{ppo_evaluate.1} parent=1 // pred_check_branch
      %34 = sbr.rel (0) target = $region25
    $region24: #{ppo_evaluate.1} parent=1 // pred_region
      _
    $region25: #{ppo_evaluate.1} parent=1 // pred_fallthru
      _
    // Predicated region
    $region26: #{ppo_evaluate.1} parent=1 // pred_check
      _
    $region27: #{ppo_evaluate.1} parent=1 // pred_check_branch
      %36 = sbr.rel (0) target = $region29
    $region28: #{ppo_evaluate.1} parent=1 // pred_region
      %38 = dma.done [#allocation3], 8192
    $region29: #{ppo_evaluate.1} parent=1 // pred_fallthru
      _
    %v39 = vld [vmem:[%s0] sm:$0xff]
    %v40 = vld [vmem:[%s0 + $0x8] sm:$0xff]
    %v41 = vld [vmem:[%s0 + $0x10] sm:$0xff]
    %v42 = vld [vmem:[%s0 + $0x18] sm:$0xff]
    %v43 = vld [vmem:[%s0 + $0x20] sm:$0xff]
    %v44 = vld [vmem:[%s0 + $0x28] sm:$0xff]
    %v45 = vld [vmem:[%s0 + $0x30] sm:$0xff]
    %v46 = vld [vmem:[%s0 + $0x38] sm:$0xff]
    %v47 = vld [vmem:[%s2] sm:$0xff]
    %v48 = vld [vmem:[%s2 + $0x8] sm:$0xff]
    %v49 = vld [vmem:[%s2 + $0x10] sm:$0xff]
    %v50 = vld [vmem:[%s2 + $0x18] sm:$0xff]
    %v51 = vld [vmem:[%s2 + $0x20] sm:$0xff]
    %v52 = vld [vmem:[%s2 + $0x28] sm:$0xff]
    %v53 = vld [vmem:[%s2 + $0x30] sm:$0xff]
    %v54 = vld [vmem:[%s2 + $0x38] sm:$0xff]
    %v55 = vld [vmem:[%s3] sm:$0xf]
    %v57 = vperm.slane %v55, 0
    %v58 = vperm.slane %v55, 1
    %v59 = vperm.slane %v55, 2
    %v60 = vperm.slane %v55, 3
    %vm65 = vcmask 130048
    %v67 = vsel %vm65, %v39, 0
    %v70 = vsel %vm65, %v40, 0
    %v73 = vsel %vm65, %v41, 0
    %v76 = vsel %vm65, %v42, 0
    %v79 = vsel %vm65, %v43, 0
    %v82 = vsel %vm65, %v44, 0
    %v85 = vsel %vm65, %v45, 0
    %v88 = vsel %vm65, %v46, 0
    %90 = vmatpush.msra.mxu0 0.0
    %91 = vmatpush.msra.mxu0 0.0
    %92 = vmatpush.msra.mxu0 0.0
    %93 = vmatpush.msra.mxu0 0.0
    %94 = vmatpush.msra.mxu0 0.0
    %95 = vmatpush.msra.mxu0 0.0
    %96 = vmatpush.msra.mxu0 0.0
    %97 = vmatpush.msra.mxu0 0.0
    %98 = vmatpush.msra.mxu0 0.0
    %99 = vmatpush.msra.mxu0 0.0
    %100 = vmatpush.msra.mxu0 0.0
    %101 = vmatpush.msra.mxu0 0.0
    %102 = vmatpush.msra.mxu0 0.0
    %103 = vmatpush.msra.mxu0 0.0
    %104 = vmatpush.msra.mxu0 %v51
    %105 = vmatpush.msra.mxu0 %v47
    %106 = vmatmul.f32.gmra.mxu0 %v67
    %v107 = vpop.f32.mrf.mxu0
    %v108 = vadd.f32 %v57, %v107
    %109 = vmatmul.f32.gmra.mxu0 %v70
    %v110 = vpop.f32.mrf.mxu0
    %v111 = vadd.f32 %v57, %v110
    %112 = vmatmul.f32.gmra.mxu0 %v73
    %v113 = vpop.f32.mrf.mxu0
    %v114 = vadd.f32 %v57, %v113
    %115 = vmatmul.f32.gmra.mxu0 %v76
    %v116 = vpop.f32.mrf.mxu0
    %v117 = vadd.f32 %v57, %v116
    %118 = vmatmul.f32.gmra.mxu0 %v79
    %v119 = vpop.f32.mrf.mxu0
    %v120 = vadd.f32 %v57, %v119
    %121 = vmatmul.f32.gmra.mxu0 %v82
    %v122 = vpop.f32.mrf.mxu0
    %v123 = vadd.f32 %v57, %v122
    %124 = vmatmul.f32.gmra.mxu0 %v85
    %v125 = vpop.f32.mrf.mxu0
    %v126 = vadd.f32 %v57, %v125
    %127 = vmatmul.f32.gmra.mxu0 %v88
    %v128 = vpop.f32.mrf.mxu0
    %v129 = vadd.f32 %v57, %v128
    %130 = vdwg.mxu0
    %131 = vmatpush.msra.mxu0 0.0
    %132 = vmatpush.msra.mxu0 0.0
    %133 = vmatpush.msra.mxu0 0.0
    %134 = vmatpush.msra.mxu0 0.0
    %135 = vmatpush.msra.mxu0 0.0
    %136 = vmatpush.msra.mxu0 0.0
    %137 = vmatpush.msra.mxu0 0.0
    %138 = vmatpush.msra.mxu0 0.0
    %139 = vmatpush.msra.mxu0 0.0
    %140 = vmatpush.msra.mxu0 0.0
    %141 = vmatpush.msra.mxu0 0.0
    %142 = vmatpush.msra.mxu0 0.0
    %143 = vmatpush.msra.mxu0 0.0
    %144 = vmatpush.msra.mxu0 0.0
    %145 = vmatpush.msra.mxu0 %v52
    %146 = vmatpush.msra.mxu0 %v48
    %147 = vmatmul.f32.gmra.mxu0 %v67
    %v148 = vpop.f32.mrf.mxu0
    %v149 = vadd.f32 %v58, %v148
    %150 = vmatmul.f32.gmra.mxu0 %v70
    %v151 = vpop.f32.mrf.mxu0
    %v152 = vadd.f32 %v58, %v151
    %153 = vmatmul.f32.gmra.mxu0 %v73
    %v154 = vpop.f32.mrf.mxu0
    %v155 = vadd.f32 %v58, %v154
    %156 = vmatmul.f32.gmra.mxu0 %v76
    %v157 = vpop.f32.mrf.mxu0
    %v158 = vadd.f32 %v58, %v157
    %159 = vmatmul.f32.gmra.mxu0 %v79
    %v160 = vpop.f32.mrf.mxu0
    %v161 = vadd.f32 %v58, %v160
    %162 = vmatmul.f32.gmra.mxu0 %v82
    %v163 = vpop.f32.mrf.mxu0
    %v164 = vadd.f32 %v58, %v163
    %165 = vmatmul.f32.gmra.mxu0 %v85
    %v166 = vpop.f32.mrf.mxu0
    %v167 = vadd.f32 %v58, %v166
    %168 = vmatmul.f32.gmra.mxu0 %v88
    %v169 = vpop.f32.mrf.mxu0
    %v170 = vadd.f32 %v58, %v169
    %171 = vdwg.mxu0
    %172 = vmatpush.msra.mxu0 0.0
    %173 = vmatpush.msra.mxu0 0.0
    %174 = vmatpush.msra.mxu0 0.0
    %175 = vmatpush.msra.mxu0 0.0
    %176 = vmatpush.msra.mxu0 0.0
    %177 = vmatpush.msra.mxu0 0.0
    %178 = vmatpush.msra.mxu0 0.0
    %179 = vmatpush.msra.mxu0 0.0
    %180 = vmatpush.msra.mxu0 0.0
    %181 = vmatpush.msra.mxu0 0.0
    %182 = vmatpush.msra.mxu0 0.0
    %183 = vmatpush.msra.mxu0 0.0
    %184 = vmatpush.msra.mxu0 0.0
    %185 = vmatpush.msra.mxu0 0.0
    %186 = vmatpush.msra.mxu0 %v53
    %187 = vmatpush.msra.mxu0 %v49
    %188 = vmatmul.f32.gmra.mxu0 %v67
    %v189 = vpop.f32.mrf.mxu0
    %v190 = vadd.f32 %v59, %v189
    %191 = vmatmul.f32.gmra.mxu0 %v70
    %v192 = vpop.f32.mrf.mxu0
    %v193 = vadd.f32 %v59, %v192
    %194 = vmatmul.f32.gmra.mxu0 %v73
    %v195 = vpop.f32.mrf.mxu0
    %v196 = vadd.f32 %v59, %v195
    %197 = vmatmul.f32.gmra.mxu0 %v76
    %v198 = vpop.f32.mrf.mxu0
    %v199 = vadd.f32 %v59, %v198
    %200 = vmatmul.f32.gmra.mxu0 %v79
    %v201 = vpop.f32.mrf.mxu0
    %v202 = vadd.f32 %v59, %v201
    %203 = vmatmul.f32.gmra.mxu0 %v82
    %v204 = vpop.f32.mrf.mxu0
    %v205 = vadd.f32 %v59, %v204
    %206 = vmatmul.f32.gmra.mxu0 %v85
    %v207 = vpop.f32.mrf.mxu0
    %v208 = vadd.f32 %v59, %v207
    %209 = vmatmul.f32.gmra.mxu0 %v88
    %v210 = vpop.f32.mrf.mxu0
    %v211 = vadd.f32 %v59, %v210
    %212 = vdwg.mxu0
    %213 = vmatpush.msra.mxu0 0.0
    %214 = vmatpush.msra.mxu0 0.0
    %215 = vmatpush.msra.mxu0 0.0
    %216 = vmatpush.msra.mxu0 0.0
    %217 = vmatpush.msra.mxu0 0.0
    %218 = vmatpush.msra.mxu0 0.0
    %219 = vmatpush.msra.mxu0 0.0
    %220 = vmatpush.msra.mxu0 0.0
    %221 = vmatpush.msra.mxu0 0.0
    %222 = vmatpush.msra.mxu0 0.0
    %223 = vmatpush.msra.mxu0 0.0
    %224 = vmatpush.msra.mxu0 0.0
    %225 = vmatpush.msra.mxu0 0.0
    %226 = vmatpush.msra.mxu0 0.0
    %227 = vmatpush.msra.mxu0 %v54
    %228 = vmatpush.msra.mxu0 %v50
    %229 = vmatmul.f32.gmra.mxu0 %v67
    %v230 = vpop.f32.mrf.mxu0
    %v231 = vadd.f32 %v60, %v230
    %232 = vmatmul.f32.gmra.mxu0 %v70
    %v233 = vpop.f32.mrf.mxu0
    %v234 = vadd.f32 %v60, %v233
    %235 = vmatmul.f32.gmra.mxu0 %v73
    %v236 = vpop.f32.mrf.mxu0
    %v237 = vadd.f32 %v60, %v236
    %238 = vmatmul.f32.gmra.mxu0 %v76
    %v239 = vpop.f32.mrf.mxu0
    %v240 = vadd.f32 %v60, %v239
    %241 = vmatmul.f32.gmra.mxu0 %v79
    %v242 = vpop.f32.mrf.mxu0
    %v243 = vadd.f32 %v60, %v242
    %244 = vmatmul.f32.gmra.mxu0 %v82
    %v245 = vpop.f32.mrf.mxu0
    %v246 = vadd.f32 %v60, %v245
    %247 = vmatmul.f32.gmra.mxu0 %v85
    %v248 = vpop.f32.mrf.mxu0
    %v249 = vadd.f32 %v60, %v248
    %250 = vmatmul.f32.gmra.mxu0 %v88
    %v251 = vpop.f32.mrf.mxu0
    %v252 = vadd.f32 %v60, %v251
    %253 = vdwg.mxu0
    %v254 = vmax.f32 %v108, 0.0
    %v255 = vmax.f32 %v149, 0.0
    %v256 = vmax.f32 %v190, 0.0
    %v257 = vmax.f32 %v231, 0.0
    %v258 = vmax.f32 %v111, 0.0
    %v259 = vmax.f32 %v152, 0.0
    %v260 = vmax.f32 %v193, 0.0
    %v261 = vmax.f32 %v234, 0.0
    %v262 = vmax.f32 %v114, 0.0
    %v263 = vmax.f32 %v155, 0.0
    %v264 = vmax.f32 %v196, 0.0
    %v265 = vmax.f32 %v237, 0.0
    %v266 = vmax.f32 %v117, 0.0
    %v267 = vmax.f32 %v158, 0.0
    %v268 = vmax.f32 %v199, 0.0
    %v269 = vmax.f32 %v240, 0.0
    %v270 = vmax.f32 %v120, 0.0
    %v271 = vmax.f32 %v161, 0.0
    %v272 = vmax.f32 %v202, 0.0
    %v273 = vmax.f32 %v243, 0.0
    %v274 = vmax.f32 %v123, 0.0
    %v275 = vmax.f32 %v164, 0.0
    %v276 = vmax.f32 %v205, 0.0
    %v277 = vmax.f32 %v246, 0.0
    %v278 = vmax.f32 %v126, 0.0
    %v279 = vmax.f32 %v167, 0.0
    %v280 = vmax.f32 %v208, 0.0
    %v281 = vmax.f32 %v249, 0.0
    %v282 = vmax.f32 %v129, 0.0
    %v283 = vmax.f32 %v170, 0.0
    %v284 = vmax.f32 %v211, 0.0
    %v285 = vmax.f32 %v252, 0.0
    %v286 = vld [vmem:[#allocation2] sm:$0xff]
    %v287 = vld [vmem:[#allocation2 + $0x8] sm:$0xff]
    %v288 = vld [vmem:[#allocation2 + $0x10] sm:$0xff]
    %v289 = vld [vmem:[#allocation2 + $0x18] sm:$0xff]
    %v290 = vld [vmem:[#allocation2 + $0x20] sm:$0xff]
    %v291 = vld [vmem:[#allocation2 + $0x28] sm:$0xff]
    %v292 = vld [vmem:[#allocation2 + $0x30] sm:$0xff]
    %v293 = vld [vmem:[#allocation2 + $0x38] sm:$0xff]
    %v294 = vld [vmem:[#allocation2 + $0x40] sm:$0xff]
    %v295 = vld [vmem:[#allocation2 + $0x48] sm:$0xff]
    %v296 = vld [vmem:[#allocation2 + $0x50] sm:$0xff]
    %v297 = vld [vmem:[#allocation2 + $0x58] sm:$0xff]
    %v298 = vld [vmem:[#allocation2 + $0x60] sm:$0xff]
    %v299 = vld [vmem:[#allocation2 + $0x68] sm:$0xff]
    %v300 = vld [vmem:[#allocation2 + $0x70] sm:$0xff]
    %v301 = vld [vmem:[#allocation2 + $0x78] sm:$0xff]
    %v302 = vld [vmem:[#allocation2 + $0x80] sm:$0xff]
    %v303 = vld [vmem:[#allocation2 + $0x88] sm:$0xff]
    %v304 = vld [vmem:[#allocation2 + $0x90] sm:$0xff]
    %v305 = vld [vmem:[#allocation2 + $0x98] sm:$0xff]
    %v306 = vld [vmem:[#allocation2 + $0xa0] sm:$0xff]
    %v307 = vld [vmem:[#allocation2 + $0xa8] sm:$0xff]
    %v308 = vld [vmem:[#allocation2 + $0xb0] sm:$0xff]
    %v309 = vld [vmem:[#allocation2 + $0xb8] sm:$0xff]
    %v310 = vld [vmem:[#allocation2 + $0xc0] sm:$0xff]
    %v311 = vld [vmem:[#allocation2 + $0xc8] sm:$0xff]
    %v312 = vld [vmem:[#allocation2 + $0xd0] sm:$0xff]
    %v313 = vld [vmem:[#allocation2 + $0xd8] sm:$0xff]
    %v314 = vld [vmem:[#allocation2 + $0xe0] sm:$0xff]
    %v315 = vld [vmem:[#allocation2 + $0xe8] sm:$0xff]
    %v316 = vld [vmem:[#allocation2 + $0xf0] sm:$0xff]
    %v317 = vld [vmem:[#allocation2 + $0xf8] sm:$0xff]
    %v318 = vld [vmem:[#allocation2 + $0x100] sm:$0xff]
    %v319 = vld [vmem:[#allocation2 + $0x108] sm:$0xff]
    %v320 = vld [vmem:[#allocation2 + $0x110] sm:$0xff]
    %v321 = vld [vmem:[#allocation2 + $0x118] sm:$0xff]
    %v322 = vld [vmem:[#allocation2 + $0x120] sm:$0xff]
    %v323 = vld [vmem:[#allocation2 + $0x128] sm:$0xff]
    %v324 = vld [vmem:[#allocation2 + $0x130] sm:$0xff]
    %v325 = vld [vmem:[#allocation2 + $0x138] sm:$0xff]
    %v326 = vld [vmem:[#allocation2 + $0x140] sm:$0xff]
    %v327 = vld [vmem:[#allocation2 + $0x148] sm:$0xff]
    %v328 = vld [vmem:[#allocation2 + $0x150] sm:$0xff]
    %v329 = vld [vmem:[#allocation2 + $0x158] sm:$0xff]
    %v330 = vld [vmem:[#allocation2 + $0x160] sm:$0xff]
    %v331 = vld [vmem:[#allocation2 + $0x168] sm:$0xff]
    %v332 = vld [vmem:[#allocation2 + $0x170] sm:$0xff]
    %v333 = vld [vmem:[#allocation2 + $0x178] sm:$0xff]
    %v334 = vld [vmem:[#allocation2 + $0x180] sm:$0xff]
    %v335 = vld [vmem:[#allocation2 + $0x188] sm:$0xff]
    %v336 = vld [vmem:[#allocation2 + $0x190] sm:$0xff]
    %v337 = vld [vmem:[#allocation2 + $0x198] sm:$0xff]
    %v338 = vld [vmem:[#allocation2 + $0x1a0] sm:$0xff]
    %v339 = vld [vmem:[#allocation2 + $0x1a8] sm:$0xff]
    %v340 = vld [vmem:[#allocation2 + $0x1b0] sm:$0xff]
    %v341 = vld [vmem:[#allocation2 + $0x1b8] sm:$0xff]
    %v342 = vld [vmem:[#allocation2 + $0x1c0] sm:$0xff]
    %v343 = vld [vmem:[#allocation2 + $0x1c8] sm:$0xff]
    %v344 = vld [vmem:[#allocation2 + $0x1d0] sm:$0xff]
    %v345 = vld [vmem:[#allocation2 + $0x1d8] sm:$0xff]
    %v346 = vld [vmem:[#allocation2 + $0x1e0] sm:$0xff]
    %v347 = vld [vmem:[#allocation2 + $0x1e8] sm:$0xff]
    %v348 = vld [vmem:[#allocation2 + $0x1f0] sm:$0xff]
    %v349 = vld [vmem:[#allocation2 + $0x1f8] sm:$0xff]
    %v350 = vld [vmem:[%s5] sm:$0x1]
    %v352 = vperm.slane %v350, 0
    %354 = vmatpush.msra.mxu0 %v301
    %355 = vmatpush.msra.mxu0 %v300
    %356 = vmatpush.msra.mxu0 %v299
    %357 = vmatpush.msra.mxu0 %v298
    %358 = vmatpush.msra.mxu0 %v297
    %359 = vmatpush.msra.mxu0 %v296
    %360 = vmatpush.msra.mxu0 %v295
    %361 = vmatpush.msra.mxu0 %v294
    %362 = vmatpush.msra.mxu0 %v293
    %363 = vmatpush.msra.mxu0 %v292
    %364 = vmatpush.msra.mxu0 %v291
    %365 = vmatpush.msra.mxu0 %v290
    %366 = vmatpush.msra.mxu0 %v289
    %367 = vmatpush.msra.mxu0 %v288
    %368 = vmatpush.msra.mxu0 %v287
    %369 = vmatpush.msra.mxu0 %v286
    %370 = vmatmul.f32.gmra.mxu0 %v254
    %v371 = vpop.f32.mrf.mxu0
    %v372 = vadd.f32 %v352, %v371
    %373 = vmatmul.f32.gmra.mxu0 %v258
    %v374 = vpop.f32.mrf.mxu0
    %v375 = vadd.f32 %v352, %v374
    %376 = vmatmul.f32.gmra.mxu0 %v262
    %v377 = vpop.f32.mrf.mxu0
    %v378 = vadd.f32 %v352, %v377
    %379 = vmatmul.f32.gmra.mxu0 %v266
    %v380 = vpop.f32.mrf.mxu0
    %v381 = vadd.f32 %v352, %v380
    %382 = vmatmul.f32.gmra.mxu0 %v270
    %v383 = vpop.f32.mrf.mxu0
    %v384 = vadd.f32 %v352, %v383
    %385 = vmatmul.f32.gmra.mxu0 %v274
    %v386 = vpop.f32.mrf.mxu0
    %v387 = vadd.f32 %v352, %v386
    %388 = vmatmul.f32.gmra.mxu0 %v278
    %v389 = vpop.f32.mrf.mxu0
    %v390 = vadd.f32 %v352, %v389
    %391 = vmatmul.f32.gmra.mxu0 %v282
    %v392 = vpop.f32.mrf.mxu0
    %v393 = vadd.f32 %v352, %v392
    %394 = vdwg.mxu0
    %395 = vmatpush.msra.mxu0 %v317
    %396 = vmatpush.msra.mxu0 %v316
    %397 = vmatpush.msra.mxu0 %v315
    %398 = vmatpush.msra.mxu0 %v314
    %399 = vmatpush.msra.mxu0 %v313
    %400 = vmatpush.msra.mxu0 %v312
    %401 = vmatpush.msra.mxu0 %v311
    %402 = vmatpush.msra.mxu0 %v310
    %403 = vmatpush.msra.mxu0 %v309
    %404 = vmatpush.msra.mxu0 %v308
    %405 = vmatpush.msra.mxu0 %v307
    %406 = vmatpush.msra.mxu0 %v306
    %407 = vmatpush.msra.mxu0 %v305
    %408 = vmatpush.msra.mxu0 %v304
    %409 = vmatpush.msra.mxu0 %v303
    %410 = vmatpush.msra.mxu0 %v302
    %411 = vmatmul.f32.gmra.mxu0 %v255
    %v412 = vpop.f32.mrf.mxu0
    %v413 = vadd.f32 %v372, %v412
    %414 = vmatmul.f32.gmra.mxu0 %v259
    %v415 = vpop.f32.mrf.mxu0
    %v416 = vadd.f32 %v375, %v415
    %417 = vmatmul.f32.gmra.mxu0 %v263
    %v418 = vpop.f32.mrf.mxu0
    %v419 = vadd.f32 %v378, %v418
    %420 = vmatmul.f32.gmra.mxu0 %v267
    %v421 = vpop.f32.mrf.mxu0
    %v422 = vadd.f32 %v381, %v421
    %423 = vmatmul.f32.gmra.mxu0 %v271
    %v424 = vpop.f32.mrf.mxu0
    %v425 = vadd.f32 %v384, %v424
    %426 = vmatmul.f32.gmra.mxu0 %v275
    %v427 = vpop.f32.mrf.mxu0
    %v428 = vadd.f32 %v387, %v427
    %429 = vmatmul.f32.gmra.mxu0 %v279
    %v430 = vpop.f32.mrf.mxu0
    %v431 = vadd.f32 %v390, %v430
    %432 = vmatmul.f32.gmra.mxu0 %v283
    %v433 = vpop.f32.mrf.mxu0
    %v434 = vadd.f32 %v393, %v433
    %435 = vdwg.mxu0
    %436 = vmatpush.msra.mxu0 %v333
    %437 = vmatpush.msra.mxu0 %v332
    %438 = vmatpush.msra.mxu0 %v331
    %439 = vmatpush.msra.mxu0 %v330
    %440 = vmatpush.msra.mxu0 %v329
    %441 = vmatpush.msra.mxu0 %v328
    %442 = vmatpush.msra.mxu0 %v327
    %443 = vmatpush.msra.mxu0 %v326
    %444 = vmatpush.msra.mxu0 %v325
    %445 = vmatpush.msra.mxu0 %v324
    %446 = vmatpush.msra.mxu0 %v323
    %447 = vmatpush.msra.mxu0 %v322
    %448 = vmatpush.msra.mxu0 %v321
    %449 = vmatpush.msra.mxu0 %v320
    %450 = vmatpush.msra.mxu0 %v319
    %451 = vmatpush.msra.mxu0 %v318
    %452 = vmatmul.f32.gmra.mxu0 %v256
    %v453 = vpop.f32.mrf.mxu0
    %v454 = vadd.f32 %v413, %v453
    %455 = vmatmul.f32.gmra.mxu0 %v260
    %v456 = vpop.f32.mrf.mxu0
    %v457 = vadd.f32 %v416, %v456
    %458 = vmatmul.f32.gmra.mxu0 %v264
    %v459 = vpop.f32.mrf.mxu0
    %v460 = vadd.f32 %v419, %v459
    %461 = vmatmul.f32.gmra.mxu0 %v268
    %v462 = vpop.f32.mrf.mxu0
    %v463 = vadd.f32 %v422, %v462
    %464 = vmatmul.f32.gmra.mxu0 %v272
    %v465 = vpop.f32.mrf.mxu0
    %v466 = vadd.f32 %v425, %v465
    %467 = vmatmul.f32.gmra.mxu0 %v276
    %v468 = vpop.f32.mrf.mxu0
    %v469 = vadd.f32 %v428, %v468
    %470 = vmatmul.f32.gmra.mxu0 %v280
    %v471 = vpop.f32.mrf.mxu0
    %v472 = vadd.f32 %v431, %v471
    %473 = vmatmul.f32.gmra.mxu0 %v284
    %v474 = vpop.f32.mrf.mxu0
    %v475 = vadd.f32 %v434, %v474
    %476 = vdwg.mxu0
    %477 = vmatpush.msra.mxu0 %v349
    %478 = vmatpush.msra.mxu0 %v348
    %479 = vmatpush.msra.mxu0 %v347
    %480 = vmatpush.msra.mxu0 %v346
    %481 = vmatpush.msra.mxu0 %v345
    %482 = vmatpush.msra.mxu0 %v344
    %483 = vmatpush.msra.mxu0 %v343
    %484 = vmatpush.msra.mxu0 %v342
    %485 = vmatpush.msra.mxu0 %v341
    %486 = vmatpush.msra.mxu0 %v340
    %487 = vmatpush.msra.mxu0 %v339
    %488 = vmatpush.msra.mxu0 %v338
    %489 = vmatpush.msra.mxu0 %v337
    %490 = vmatpush.msra.mxu0 %v336
    %491 = vmatpush.msra.mxu0 %v335
    %492 = vmatpush.msra.mxu0 %v334
    %493 = vmatmul.f32.gmra.mxu0 %v257
    %v494 = vpop.f32.mrf.mxu0
    %v495 = vadd.f32 %v454, %v494
    %496 = vmatmul.f32.gmra.mxu0 %v261
    %v497 = vpop.f32.mrf.mxu0
    %v498 = vadd.f32 %v457, %v497
    %499 = vmatmul.f32.gmra.mxu0 %v265
    %v500 = vpop.f32.mrf.mxu0
    %v501 = vadd.f32 %v460, %v500
    %502 = vmatmul.f32.gmra.mxu0 %v269
    %v503 = vpop.f32.mrf.mxu0
    %v504 = vadd.f32 %v463, %v503
    %505 = vmatmul.f32.gmra.mxu0 %v273
    %v506 = vpop.f32.mrf.mxu0
    %v507 = vadd.f32 %v466, %v506
    %508 = vmatmul.f32.gmra.mxu0 %v277
    %v509 = vpop.f32.mrf.mxu0
    %v510 = vadd.f32 %v469, %v509
    %511 = vmatmul.f32.gmra.mxu0 %v281
    %v512 = vpop.f32.mrf.mxu0
    %v513 = vadd.f32 %v472, %v512
    %514 = vmatmul.f32.gmra.mxu0 %v285
    %v515 = vpop.f32.mrf.mxu0
    %v516 = vadd.f32 %v475, %v515
    %517 = vdwg.mxu0
    %v518 = vlaneseq
    %v519 = vand.u32 %v518, 127
    %vm520 = vcmp.lt.s32.totalorder %v519, 8
    %v521 = vsel %vm520, %v495, -1e+30
    %v522 = vsel %vm520, %v498, -1e+30
    %v523 = vsel %vm520, %v501, -1e+30
    %v524 = vsel %vm520, %v504, -1e+30
    %v525 = vsel %vm520, %v507, -1e+30
    %v526 = vsel %vm520, %v510, -1e+30
    %v527 = vsel %vm520, %v513, -1e+30
    %v528 = vsel %vm520, %v516, -1e+30
    %529 = vmax.xlane.f32.xlu0 %v521
    %v530 = vpop.xlane.xlu0 %529
    %531 = vmax.xlane.f32.xlu0 %v522
    %v532 = vpop.xlane.xlu0 %531
    %533 = vmax.xlane.f32.xlu0 %v523
    %v534 = vpop.xlane.xlu0 %533
    %535 = vmax.xlane.f32.xlu0 %v524
    %v536 = vpop.xlane.xlu0 %535
    %537 = vmax.xlane.f32.xlu0 %v525
    %v538 = vpop.xlane.xlu0 %537
    %539 = vmax.xlane.f32.xlu0 %v526
    %v540 = vpop.xlane.xlu0 %539
    %541 = vmax.xlane.f32.xlu0 %v527
    %v542 = vpop.xlane.xlu0 %541
    %543 = vmax.xlane.f32.xlu0 %v528
    %v544 = vpop.xlane.xlu0 %543
    %v545 = vsub.f32 %v521, %v530
    %v546 = vsub.f32 %v522, %v532
    %v547 = vsub.f32 %v523, %v534
    %v548 = vsub.f32 %v524, %v536
    %v549 = vsub.f32 %v525, %v538
    %v550 = vsub.f32 %v526, %v540
    %v551 = vsub.f32 %v527, %v542
    %v552 = vsub.f32 %v528, %v544
    %v553 = vmul.f32 %v545, 1.442695
    %v554 = vpow.pop %v553
    %v555 = vmul.f32 %v546, 1.442695
    %v556 = vpow.pop %v555
    %v557 = vmul.f32 %v547, 1.442695
    %v558 = vpow.pop %v557
    %v559 = vmul.f32 %v548, 1.442695
    %v560 = vpow.pop %v559
    %v561 = vmul.f32 %v549, 1.442695
    %v562 = vpow.pop %v561
    %v563 = vmul.f32 %v550, 1.442695
    %v564 = vpow.pop %v563
    %v565 = vmul.f32 %v551, 1.442695
    %v566 = vpow.pop %v565
    %v567 = vmul.f32 %v552, 1.442695
    %v568 = vpow.pop %v567
    %569 = vadd.xlane.f32.xlu0 %v554
    %v570 = vpop.xlane.xlu0 %569
    %571 = vadd.xlane.f32.xlu0 %v556
    %v572 = vpop.xlane.xlu0 %571
    %573 = vadd.xlane.f32.xlu0 %v558
    %v574 = vpop.xlane.xlu0 %573
    %575 = vadd.xlane.f32.xlu0 %v560
    %v576 = vpop.xlane.xlu0 %575
    %577 = vadd.xlane.f32.xlu0 %v562
    %v578 = vpop.xlane.xlu0 %577
    %579 = vadd.xlane.f32.xlu0 %v564
    %v580 = vpop.xlane.xlu0 %579
    %581 = vadd.xlane.f32.xlu0 %v566
    %v582 = vpop.xlane.xlu0 %581
    %583 = vadd.xlane.f32.xlu0 %v568
    %v584 = vpop.xlane.xlu0 %583
    %v585 = vlog2.pop %v570
    %v586 = vmul.f32 %v585, 0.6931472
    %v587 = vlog2.pop %v572
    %v588 = vmul.f32 %v587, 0.6931472
    %v589 = vlog2.pop %v574
    %v590 = vmul.f32 %v589, 0.6931472
    %v591 = vlog2.pop %v576
    %v592 = vmul.f32 %v591, 0.6931472
    %v593 = vlog2.pop %v578
    %v594 = vmul.f32 %v593, 0.6931472
    %v595 = vlog2.pop %v580
    %v596 = vmul.f32 %v595, 0.6931472
    %v597 = vlog2.pop %v582
    %v598 = vmul.f32 %v597, 0.6931472
    %v599 = vlog2.pop %v584
    %v600 = vmul.f32 %v599, 0.6931472
    %v601 = vsub.f32 %v545, %v586
    %v602 = vsub.f32 %v546, %v588
    %v603 = vsub.f32 %v547, %v590
    %v604 = vsub.f32 %v548, %v592
    %v605 = vsub.f32 %v549, %v594
    %v606 = vsub.f32 %v550, %v596
    %v607 = vsub.f32 %v551, %v598
    %v608 = vsub.f32 %v552, %v600
    %v609 = vmul.f32 %v601, 1.442695
    %v610 = vpow.pop %v609
    %v611 = vmul.f32 %v602, 1.442695
    %v612 = vpow.pop %v611
    %v613 = vmul.f32 %v603, 1.442695
    %v614 = vpow.pop %v613
    %v615 = vmul.f32 %v604, 1.442695
    %v616 = vpow.pop %v615
    %v617 = vmul.f32 %v605, 1.442695
    %v618 = vpow.pop %v617
    %v619 = vmul.f32 %v606, 1.442695
    %v620 = vpow.pop %v619
    %v621 = vmul.f32 %v607, 1.442695
    %v622 = vpow.pop %v621
    %v623 = vmul.f32 %v608, 1.442695
    %v624 = vpow.pop %v623
    %v625 = vld [vmem:[%s1] sm:$0xff]
    %v626 = vld [vmem:[%s1 + $0x8] sm:$0xff]
    %v627 = vld [vmem:[%s1 + $0x10] sm:$0xff]
    %v628 = vld [vmem:[%s1 + $0x18] sm:$0xff]
    %v629 = vld [vmem:[%s1 + $0x20] sm:$0xff]
    %v630 = vld [vmem:[%s1 + $0x28] sm:$0xff]
    %v631 = vld [vmem:[%s1 + $0x30] sm:$0xff]
    %v632 = vld [vmem:[%s1 + $0x38] sm:$0xff]
    %633 = vset.pattern.permute.xlu0 0
    %634 = vperm.xlu0 %633, %v625
    %v635 = vpop.permute.xlu0 %634
    %636 = vset.pattern.permute.xlu0 0
    %637 = vperm.xlu0 %636, %v626
    %v638 = vpop.permute.xlu0 %637
    %639 = vset.pattern.permute.xlu0 0
    %640 = vperm.xlu0 %639, %v627
    %v641 = vpop.permute.xlu0 %640
    %642 = vset.pattern.permute.xlu0 0
    %643 = vperm.xlu0 %642, %v628
    %v644 = vpop.permute.xlu0 %643
    %645 = vset.pattern.permute.xlu0 0
    %646 = vperm.xlu0 %645, %v629
    %v647 = vpop.permute.xlu0 %646
    %648 = vset.pattern.permute.xlu0 0
    %649 = vperm.xlu0 %648, %v630
    %v650 = vpop.permute.xlu0 %649
    %651 = vset.pattern.permute.xlu0 0
    %652 = vperm.xlu0 %651, %v631
    %v653 = vpop.permute.xlu0 %652
    %654 = vset.pattern.permute.xlu0 0
    %655 = vperm.xlu0 %654, %v632
    %v656 = vpop.permute.xlu0 %655
    %vm657 = vcmp.eq.s32.totalorder %v519, %v635
    %vm658 = vcmp.eq.s32.totalorder %v519, %v638
    %vm659 = vcmp.eq.s32.totalorder %v519, %v641
    %vm660 = vcmp.eq.s32.totalorder %v519, %v644
    %vm661 = vcmp.eq.s32.totalorder %v519, %v647
    %vm662 = vcmp.eq.s32.totalorder %v519, %v650
    %vm663 = vcmp.eq.s32.totalorder %v519, %v653
    %vm664 = vcmp.eq.s32.totalorder %v519, %v656
    %v665 = vsel %vm657, %v601, 0.0
    %v666 = vsel %vm658, %v602, 0.0
    %v667 = vsel %vm659, %v603, 0.0
    %v668 = vsel %vm660, %v604, 0.0
    %v669 = vsel %vm661, %v605, 0.0
    %v670 = vsel %vm662, %v606, 0.0
    %v671 = vsel %vm663, %v607, 0.0
    %v672 = vsel %vm664, %v608, 0.0
    %673 = vadd.xlane.f32.xlu0 %v665
    %v674 = vpop.xlane.xlu0 %673
    %675 = vadd.xlane.f32.xlu0 %v666
    %v676 = vpop.xlane.xlu0 %675
    %677 = vadd.xlane.f32.xlu0 %v667
    %v678 = vpop.xlane.xlu0 %677
    %679 = vadd.xlane.f32.xlu0 %v668
    %v680 = vpop.xlane.xlu0 %679
    %681 = vadd.xlane.f32.xlu0 %v669
    %v682 = vpop.xlane.xlu0 %681
    %683 = vadd.xlane.f32.xlu0 %v670
    %v684 = vpop.xlane.xlu0 %683
    %685 = vadd.xlane.f32.xlu0 %v671
    %v686 = vpop.xlane.xlu0 %685
    %687 = vadd.xlane.f32.xlu0 %v672
    %v688 = vpop.xlane.xlu0 %687
    %v689 = vmul.f32 %v610, %v601
    %v690 = vmul.f32 %v612, %v602
    %v691 = vmul.f32 %v614, %v603
    %v692 = vmul.f32 %v616, %v604
    %v693 = vmul.f32 %v618, %v605
    %v694 = vmul.f32 %v620, %v606
    %v695 = vmul.f32 %v622, %v607
    %v696 = vmul.f32 %v624, %v608
    %697 = vadd.xlane.f32.xlu0 %v689
    %v698 = vpop.xlane.xlu0 %697
    %699 = vadd.xlane.f32.xlu0 %v690
    %v700 = vpop.xlane.xlu0 %699
    %701 = vadd.xlane.f32.xlu0 %v691
    %v702 = vpop.xlane.xlu0 %701
    %703 = vadd.xlane.f32.xlu0 %v692
    %v704 = vpop.xlane.xlu0 %703
    %705 = vadd.xlane.f32.xlu0 %v693
    %v706 = vpop.xlane.xlu0 %705
    %707 = vadd.xlane.f32.xlu0 %v694
    %v708 = vpop.xlane.xlu0 %707
    %709 = vadd.xlane.f32.xlu0 %v695
    %v710 = vpop.xlane.xlu0 %709
    %711 = vadd.xlane.f32.xlu0 %v696
    %v712 = vpop.xlane.xlu0 %711
    %v713 = vsub.f32 0.0, %v698
    %v714 = vsub.f32 0.0, %v700
    %v715 = vsub.f32 0.0, %v702
    %v716 = vsub.f32 0.0, %v704
    %v717 = vsub.f32 0.0, %v706
    %v718 = vsub.f32 0.0, %v708
    %v719 = vsub.f32 0.0, %v710
    %v720 = vsub.f32 0.0, %v712
    %vm721 = vcmp.eq.s32.totalorder %v519, 8
    %vm722 = vcmp.eq.s32.totalorder %v519, 9
    %vm723 = vcmp.eq.s32.totalorder %v519, 10
    %v724 = vsel %vm723, %v713, 0.0
    %v725 = vsel %vm723, %v714, 0.0
    %v726 = vsel %vm723, %v715, 0.0
    %v727 = vsel %vm723, %v716, 0.0
    %v728 = vsel %vm723, %v717, 0.0
    %v729 = vsel %vm723, %v718, 0.0
    %v730 = vsel %vm723, %v719, 0.0
    %v731 = vsel %vm723, %v720, 0.0
    %v732 = vsel %vm722, %v495, %v724
    %v733 = vsel %vm722, %v498, %v725
    %v734 = vsel %vm722, %v501, %v726
    %v735 = vsel %vm722, %v504, %v727
    %v736 = vsel %vm722, %v507, %v728
    %v737 = vsel %vm722, %v510, %v729
    %v738 = vsel %vm722, %v513, %v730
    %v739 = vsel %vm722, %v516, %v731
    %v740 = vsel %vm721, %v674, %v732
    %v741 = vsel %vm721, %v676, %v733
    %v742 = vsel %vm721, %v678, %v734
    %v743 = vsel %vm721, %v680, %v735
    %v744 = vsel %vm721, %v682, %v736
    %v745 = vsel %vm721, %v684, %v737
    %v746 = vsel %vm721, %v686, %v738
    %v747 = vsel %vm721, %v688, %v739
    %v748 = vadd.f32 %v610, %v740
    %v749 = vadd.f32 %v612, %v741
    %v750 = vadd.f32 %v614, %v742
    %v751 = vadd.f32 %v616, %v743
    %v752 = vadd.f32 %v618, %v744
    %v753 = vadd.f32 %v620, %v745
    %v754 = vadd.f32 %v622, %v746
    %v755 = vadd.f32 %v624, %v747
    %756 = vst [vmem:[%s6] sm:$0xff] %v748
    %757 = vst [vmem:[%s6 + $0x8] sm:$0xff] %v749
    %758 = vst [vmem:[%s6 + $0x10] sm:$0xff] %v750
    %759 = vst [vmem:[%s6 + $0x18] sm:$0xff] %v751
    %760 = vst [vmem:[%s6 + $0x20] sm:$0xff] %v752
    %761 = vst [vmem:[%s6 + $0x28] sm:$0xff] %v753
    %762 = vst [vmem:[%s6 + $0x30] sm:$0xff] %v754
    %763 = vst [vmem:[%s6 + $0x38] sm:$0xff] %v755
    // Predicated region
    $region30: #{ppo_evaluate.1} parent=1 // pred_check
      _
    $region31: #{ppo_evaluate.1} parent=1 // pred_check_branch
      %765 = sbr.rel (0) target = $region33
    $region32: #{ppo_evaluate.1} parent=1 // pred_region
      _
    $region33: #{ppo_evaluate.1} parent=1 // pred_fallthru
      _
    // Predicated region
    $region34: #{ppo_evaluate.1} parent=1 // pred_check
      _
    $region35: #{ppo_evaluate.1} parent=1 // pred_check_branch
      %767 = sbr.rel (0) target = $region37
    $region36: #{ppo_evaluate.1} parent=1 // pred_region
      _
    $region37: #{ppo_evaluate.1} parent=1 // pred_fallthru
      _
    %768 = vsyncpa [#allocation3], 1

</llo_original>
